<compile_context>
chip_gen: v7x
topology: tpu7x:2x2x1
jax: 0.10.0
libtpu: 0.0.40
codegen_flags: <defaults>
</compile_context>

<pallas_src>
import math
from functools import partial

import jax
import jax.numpy as jnp
from jax.experimental import pallas as pl
from jax.experimental.pallas import tpu as pltpu

EPS = 1e-6
SUBLANE = 8  # f32 sublane tile


def _activate(y, activation):
    """Trace-time-selected activation (matches the PyTorch module's definitions)."""
    if activation == "Hswish":
        return y * jnp.clip(y + 3.0, 0.0, 6.0) * (1.0 / 6.0)
    if activation == "ReLU":
        return jnp.maximum(y, 0.0)
    if activation == "GELU":  # tanh-approx GELU, exactly as the module writes it
        c = math.sqrt(2.0 / math.pi)
        return 0.5 * y * (1.0 + jnp.tanh(c * (y + 0.044715 * y * y * y)))
    raise ValueError(f"unknown activation: {activation}")


def double_conv_kernel(x_ref, m_ref, w1_ref, g_ref, b_ref, w2_ref, o_ref,
                       *, W, cin, activation):
    # x_ref : (Cp, Lb)       channels (zero-padded to Cp) x (nb images * H*W) lanes
    # m_ref : (9*Cp, Lb)     0/1 validity mask per (tap, channel) row; shared by both convs
    # w1_ref: (Cp, 9*Cp)     conv1 weights, tap-major columns (k*Cp + c)
    # w2_ref: (Cout, 9*Cp)   conv2 weights
    # g/b   : (Cp, 1)        LayerNorm affine (zeros in the padded rows)
    x = x_ref[...]
    mask = m_ref[...]
    Lb = x.shape[1]

    def conv3x3(a, w):
        # 3x3 "same" conv as ONE MXU matmul: 9 lane-rolled copies of `a`, stacked on the
        # contraction axis and masked once (wrapped lane positions are exactly the
        # out-of-bounds taps -> zero-padding semantics).
        taps = []
        for k in range(9):
            dy, dx = k // 3 - 1, k % 3 - 1
            s = dy * W + dx
            taps.append(a if s == 0 else pltpu.roll(a, (-s) % Lb, 1))
        stacked = jnp.concatenate(taps, axis=0) * mask                 # (9*Cp, Lb)
        return jnp.dot(w, stacked, preferred_element_type=jnp.float32)

    # conv1: 3x3, Cin -> Cin, padding=1, no bias (padded output rows stay exactly 0)
    y = conv3x3(x, w1_ref[...])                                        # (Cp, Lb) f32

    # channels_first LayerNorm over the real Cin channels; biased variance, eps=1e-6.
    inv_c = 1.0 / cin
    mu = jnp.sum(y, axis=0, keepdims=True) * inv_c                     # padded rows are 0
    ms = jnp.sum(y * y, axis=0, keepdims=True) * inv_c
    var = ms - mu * mu
    y = (y - mu) * jax.lax.rsqrt(var + EPS)
    y = y * g_ref[...] + b_ref[...]                                    # padded rows -> 0

    # conv2: 3x3, Cin -> Cout, padding=1, no bias, then activation
    y = conv3x3(y, w2_ref[...])                                        # (Cout, Lb) f32
    y = _activate(y, activation)
    o_ref[...] = y.astype(o_ref.dtype)


def double_conv(x_nchw, conv1_w, ln_gamma, ln_beta, conv2_w,
                activation="Hswish", nb=None):
    """x_nchw: (N, Cin, H, W); conv1_w: (Cin, Cin, 3, 3); conv2_w: (Cout, Cin, 3, 3);
    ln_gamma / ln_beta: (Cin,)."""
    N, Cin, H, W = x_nchw.shape
    Cout = conv2_w.shape[0]
    L = H * W
    cp = ((Cin + SUBLANE - 1) // SUBLANE) * SUBLANE     # channel pad -> aligned sublane tiles

    # How many images share one grid step (lanes per step = nb*L).
    if nb is None:
        nb = min(N, 8)
    if (nb * L) % 128 != 0:
        nb = N                                          # single lane-spanning block
    n_steps = pl.cdiv(N, nb)
    Np = n_steps * nb
    Lb = nb * L

    # Layout plumbing (wrapper side): channels on sublanes, batch*H*W on lanes.
    x_t = jnp.transpose(x_nchw, (1, 0, 2, 3))           # (Cin, N, H, W)
    x_t = jnp.pad(x_t, ((0, cp - Cin), (0, Np - N), (0, 0), (0, 0)))
    x_flat = x_t.reshape(cp, Np * L)

    def pack_w(w, rows_pad):
        # (O, Cin, 3, 3) -> (rows_pad, 9*cp), column index = k*cp + c with k = ky*3 + kx.
        o = w.shape[0]
        wk = jnp.transpose(w.reshape(o, Cin, 9), (0, 2, 1))            # (O, 9, Cin)
        wk = jnp.pad(wk, ((0, rows_pad - o), (0, 0), (0, cp - Cin)))   # (rows_pad, 9, cp)
        return wk.reshape(rows_pad, 9 * cp)

    w1 = pack_w(conv1_w, cp)                             # (cp, 9*cp)
    w2 = pack_w(conv2_w, Cout)                           # (Cout, 9*cp)

    g = jnp.pad(ln_gamma.astype(jnp.float32), (0, cp - Cin)).reshape(cp, 1)
    b = jnp.pad(ln_beta.astype(jnp.float32), (0, cp - Cin)).reshape(cp, 1)

    # Per-tap validity masks (zero-padding semantics), one row per (tap, channel).
    # Constant across the grid -> constant index_map, fetched once.
    pos = jnp.arange(Lb, dtype=jnp.int32) % L
    row, col = pos // W, pos % W
    mrows = []
    for k in range(9):
        dy, dx = k // 3 - 1, k % 3 - 1
        mrows.append((row + dy >= 0) & (row + dy < H) & (col + dx >= 0) & (col + dx < W))
    mask = jnp.repeat(jnp.stack(mrows, 0), cp, axis=0).astype(x_nchw.dtype)   # (9*cp, Lb)

    out_flat = pl.pallas_call(
        partial(double_conv_kernel, W=W, cin=Cin, activation=activation),
        out_shape=jax.ShapeDtypeStruct((Cout, Np * L), x_nchw.dtype),
        grid=(n_steps,),
        in_specs=[
            pl.BlockSpec((cp, Lb), lambda n: (0, n)),
            pl.BlockSpec((9 * cp, Lb), lambda n: (0, 0)),
            pl.BlockSpec((cp, 9 * cp), lambda n: (0, 0)),
            pl.BlockSpec((cp, 1), lambda n: (0, 0)),
            pl.BlockSpec((cp, 1), lambda n: (0, 0)),
            pl.BlockSpec((Cout, 9 * cp), lambda n: (0, 0)),
        ],
        out_specs=pl.BlockSpec((Cout, Lb), lambda n: (0, n)),
        compiler_params=pltpu.CompilerParams(dimension_semantics=("parallel",)),
    )(x_flat, mask, w1, g, b, w2)

    out = out_flat.reshape(Cout, Np, H, W)[:, :N]
    return jnp.transpose(out, (1, 0, 2, 3))


def _reference(x, conv1_w, ln_gamma, ln_beta, conv2_w, activation):
    """Pure-JAX reference of the same forward math (sanity check)."""
    dn = ("NCHW", "OIHW", "NCHW")
    y = jax.lax.conv_general_dilated(x, conv1_w, (1, 1), ((1, 1), (1, 1)), dimension_numbers=dn)
    mu = jnp.mean(y, axis=1, keepdims=True)
    var = jnp.mean((y - mu) ** 2, axis=1, keepdims=True)
    y = (y - mu) / jnp.sqrt(var + EPS)
    y = ln_gamma[None, :, None, None] * y + ln_beta[None, :, None, None]
    y = jax.lax.conv_general_dilated(y, conv2_w, (1, 1), ((1, 1), (1, 1)), dimension_numbers=dn)
    return _activate(y, activation)


if __name__ == "__main__":
    # Small shapes consistent with the module: N=2, in_ch=4, out_ch=8, 16x16 spatial, Hswish.
    N, in_ch, out_ch, H, W = 2, 4, 8, 16, 16
    activation = "Hswish"

    key = jax.random.PRNGKey(0)
    kx, k1, k2, kg, kb = jax.random.split(key, 5)
    x = jax.random.normal(kx, (N, in_ch, H, W), dtype=jnp.float32)
    conv1_w = 0.2 * jax.random.normal(k1, (in_ch, in_ch, 3, 3), dtype=jnp.float32)
    conv2_w = 0.2 * jax.random.normal(k2, (out_ch, in_ch, 3, 3), dtype=jnp.float32)
    ln_gamma = 1.0 + 0.1 * jax.random.normal(kg, (in_ch,), dtype=jnp.float32)
    ln_beta = 0.1 * jax.random.normal(kb, (in_ch,), dtype=jnp.float32)

    out = jax.block_until_ready(
        double_conv(x, conv1_w, ln_gamma, ln_beta, conv2_w, activation))
    ref = jax.block_until_ready(
        _reference(x, conv1_w, ln_gamma, ln_beta, conv2_w, activation))

    assert out.shape == (N, out_ch, H, W)
    err = float(jnp.max(jnp.abs(out - ref)))
    # Tolerance accounts for MXU default (bf16-pass) matmul precision vs the XLA reference.
    assert err < 5e-2, f"mismatch vs reference: {err}"

    print("KERNEL_OK")
</pallas_src>

<mosaic_0001>
module attributes {stable_mosaic.version = 11 : i64} {
  func.func @double_conv_kernel(%arg0: i32, %arg1: memref<8x512xf32, #tpu.memory_space<vmem>>, %arg2: memref<72x512xf32, #tpu.memory_space<vmem>>, %arg3: memref<8x72xf32, #tpu.memory_space<vmem>>, %arg4: memref<8x1xf32, #tpu.memory_space<vmem>>, %arg5: memref<8x1xf32, #tpu.memory_space<vmem>>, %arg6: memref<8x72xf32, #tpu.memory_space<vmem>>, %arg7: memref<8x512xf32, #tpu.memory_space<vmem>>) attributes {dimension_semantics = [#tpu.dimension_semantics<parallel>], iteration_bounds = array<i64: 1>, scalar_prefetch = 0 : i64, scratch_operands = 0 : i64, tpu.core_type = #tpu.core_type<tc>, window_params = [{transform_indices = @transform_0, window_bounds = array<i64: 8, 512>}, {pipeline_mode = #tpu.pipeline_mode<synchronous>, transform_indices = @transform_1, window_bounds = array<i64: 72, 512>}, {pipeline_mode = #tpu.pipeline_mode<synchronous>, transform_indices = @transform_2, window_bounds = array<i64: 8, 72>}, {pipeline_mode = #tpu.pipeline_mode<synchronous>, transform_indices = @transform_3, window_bounds = array<i64: 8, 1>}, {pipeline_mode = #tpu.pipeline_mode<synchronous>, transform_indices = @transform_4, window_bounds = array<i64: 8, 1>}, {pipeline_mode = #tpu.pipeline_mode<synchronous>, transform_indices = @transform_5, window_bounds = array<i64: 8, 72>}, {transform_indices = @transform_6, window_bounds = array<i64: 8, 512>}]} {
    %c0 = arith.constant 0 : index
    %c0_0 = arith.constant 0 : index
    %0 = vector.load %arg1[%c0, %c0_0] : memref<8x512xf32, #tpu.memory_space<vmem>>, vector<8x512xf32>
    %c0_1 = arith.constant 0 : index
    %c0_2 = arith.constant 0 : index
    %1 = vector.load %arg2[%c0_1, %c0_2] : memref<72x512xf32, #tpu.memory_space<vmem>>, vector<72x512xf32>
    %c0_3 = arith.constant 0 : index
    %c0_4 = arith.constant 0 : index
    %2 = vector.load %arg3[%c0_3, %c0_4] : memref<8x72xf32, #tpu.memory_space<vmem>>, vector<8x72xf32>
    %c17_i32 = arith.constant 17 : i32
    %3 = tpu.dynamic_rotate %0 by %c17_i32 dim 1 : vector<8x512xf32>, i32 -> vector<8x512xf32>
    %c16_i32 = arith.constant 16 : i32
    %4 = tpu.dynamic_rotate %0 by %c16_i32 dim 1 : vector<8x512xf32>, i32 -> vector<8x512xf32>
    %c15_i32 = arith.constant 15 : i32
    %5 = tpu.dynamic_rotate %0 by %c15_i32 dim 1 : vector<8x512xf32>, i32 -> vector<8x512xf32>
    %c1_i32 = arith.constant 1 : i32
    %6 = tpu.dynamic_rotate %0 by %c1_i32 dim 1 : vector<8x512xf32>, i32 -> vector<8x512xf32>
    %c511_i32 = arith.constant 511 : i32
    %7 = tpu.dynamic_rotate %0 by %c511_i32 dim 1 : vector<8x512xf32>, i32 -> vector<8x512xf32>
    %c497_i32 = arith.constant 497 : i32
    %8 = tpu.dynamic_rotate %0 by %c497_i32 dim 1 : vector<8x512xf32>, i32 -> vector<8x512xf32>
    %c496_i32 = arith.constant 496 : i32
    %9 = tpu.dynamic_rotate %0 by %c496_i32 dim 1 : vector<8x512xf32>, i32 -> vector<8x512xf32>
    %c495_i32 = arith.constant 495 : i32
    %10 = tpu.dynamic_rotate %0 by %c495_i32 dim 1 : vector<8x512xf32>, i32 -> vector<8x512xf32>
    %11 = tpu.concatenate %3, %4, %5, %6, %0, %7, %8, %9, %10 in 0 : vector<8x512xf32>, vector<8x512xf32>, vector<8x512xf32>, vector<8x512xf32>, vector<8x512xf32>, vector<8x512xf32>, vector<8x512xf32>, vector<8x512xf32>, vector<8x512xf32> -> vector<72x512xf32>
    %12 = arith.mulf %11, %1 : vector<72x512xf32>
    %cst = arith.constant dense<0.000000e+00> : vector<8x512xf32>
    %13 = tpu.matmul %2, %12, %cst {dimension_numbers = #tpu.dot_dimension_numbers<[1], [0], [0], [1], [0, 0, 1, 1], [], []>} : vector<8x72xf32>, vector<72x512xf32>, vector<8x512xf32> -> vector<8x512xf32>
    %cst_5 = arith.constant dense<0.000000e+00> : vector<512xf32>
    %14 = vector.multi_reduction <add>, %13, %cst_5 [0] : vector<8x512xf32> to vector<512xf32>
    %15 = vector.shape_cast %14 : vector<512xf32> to vector<1x512xf32>
    %cst_6 = arith.constant 2.500000e-01 : f32
    %16 = vector.broadcast %cst_6 : f32 to vector<1x512xf32>
    %17 = arith.mulf %15, %16 : vector<1x512xf32>
    %18 = arith.mulf %13, %13 : vector<8x512xf32>
    %cst_7 = arith.constant dense<0.000000e+00> : vector<512xf32>
    %19 = vector.multi_reduction <add>, %18, %cst_7 [0] : vector<8x512xf32> to vector<512xf32>
    %20 = vector.shape_cast %19 : vector<512xf32> to vector<1x512xf32>
    %cst_8 = arith.constant 2.500000e-01 : f32
    %21 = vector.broadcast %cst_8 : f32 to vector<1x512xf32>
    %22 = arith.mulf %20, %21 : vector<1x512xf32>
    %23 = arith.mulf %17, %17 : vector<1x512xf32>
    %24 = arith.subf %22, %23 : vector<1x512xf32>
    %25 = vector.broadcast %17 : vector<1x512xf32> to vector<8x512xf32>
    %26 = arith.subf %13, %25 : vector<8x512xf32>
    %cst_9 = arith.constant 9.99999997E-7 : f32
    %27 = vector.broadcast %cst_9 : f32 to vector<1x512xf32>
    %28 = arith.addf %24, %27 : vector<1x512xf32>
    %29 = math.rsqrt %28 : vector<1x512xf32>
    %30 = vector.broadcast %29 : vector<1x512xf32> to vector<8x512xf32>
    %31 = arith.mulf %26, %30 : vector<8x512xf32>
    %c0_10 = arith.constant 0 : index
    %c0_11 = arith.constant 0 : index
    %32 = vector.load %arg4[%c0_10, %c0_11] : memref<8x1xf32, #tpu.memory_space<vmem>>, vector<8x1xf32>
    %33 = vector.broadcast %32 : vector<8x1xf32> to vector<8x512xf32>
    %34 = arith.mulf %31, %33 : vector<8x512xf32>
    %c0_12 = arith.constant 0 : index
    %c0_13 = arith.constant 0 : index
    %35 = vector.load %arg5[%c0_12, %c0_13] : memref<8x1xf32, #tpu.memory_space<vmem>>, vector<8x1xf32>
    %36 = vector.broadcast %35 : vector<8x1xf32> to vector<8x512xf32>
    %37 = arith.addf %34, %36 : vector<8x512xf32>
    %c0_14 = arith.constant 0 : index
    %c0_15 = arith.constant 0 : index
    %38 = vector.load %arg6[%c0_14, %c0_15] : memref<8x72xf32, #tpu.memory_space<vmem>>, vector<8x72xf32>
    %c17_i32_16 = arith.constant 17 : i32
    %39 = tpu.dynamic_rotate %37 by %c17_i32_16 dim 1 : vector<8x512xf32>, i32 -> vector<8x512xf32>
    %c16_i32_17 = arith.constant 16 : i32
    %40 = tpu.dynamic_rotate %37 by %c16_i32_17 dim 1 : vector<8x512xf32>, i32 -> vector<8x512xf32>
    %c15_i32_18 = arith.constant 15 : i32
    %41 = tpu.dynamic_rotate %37 by %c15_i32_18 dim 1 : vector<8x512xf32>, i32 -> vector<8x512xf32>
    %c1_i32_19 = arith.constant 1 : i32
    %42 = tpu.dynamic_rotate %37 by %c1_i32_19 dim 1 : vector<8x512xf32>, i32 -> vector<8x512xf32>
    %c511_i32_20 = arith.constant 511 : i32
    %43 = tpu.dynamic_rotate %37 by %c511_i32_20 dim 1 : vector<8x512xf32>, i32 -> vector<8x512xf32>
    %c497_i32_21 = arith.constant 497 : i32
    %44 = tpu.dynamic_rotate %37 by %c497_i32_21 dim 1 : vector<8x512xf32>, i32 -> vector<8x512xf32>
    %c496_i32_22 = arith.constant 496 : i32
    %45 = tpu.dynamic_rotate %37 by %c496_i32_22 dim 1 : vector<8x512xf32>, i32 -> vector<8x512xf32>
    %c495_i32_23 = arith.constant 495 : i32
    %46 = tpu.dynamic_rotate %37 by %c495_i32_23 dim 1 : vector<8x512xf32>, i32 -> vector<8x512xf32>
    %47 = tpu.concatenate %39, %40, %41, %42, %37, %43, %44, %45, %46 in 0 : vector<8x512xf32>, vector<8x512xf32>, vector<8x512xf32>, vector<8x512xf32>, vector<8x512xf32>, vector<8x512xf32>, vector<8x512xf32>, vector<8x512xf32>, vector<8x512xf32> -> vector<72x512xf32>
    %48 = arith.mulf %47, %1 : vector<72x512xf32>
    %cst_24 = arith.constant dense<0.000000e+00> : vector<8x512xf32>
    %49 = tpu.matmul %38, %48, %cst_24 {dimension_numbers = #tpu.dot_dimension_numbers<[1], [0], [0], [1], [0, 0, 1, 1], [], []>} : vector<8x72xf32>, vector<72x512xf32>, vector<8x512xf32> -> vector<8x512xf32>
    %cst_25 = arith.constant 3.000000e+00 : f32
    %50 = vector.broadcast %cst_25 : f32 to vector<8x512xf32>
    %51 = arith.addf %49, %50 : vector<8x512xf32>
    %cst_26 = arith.constant 0.000000e+00 : f32
    %cst_27 = arith.constant 6.000000e+00 : f32
    %52 = vector.broadcast %cst_26 : f32 to vector<8x512xf32>
    %53 = arith.maximumf %52, %51 : vector<8x512xf32>
    %54 = vector.broadcast %cst_27 : f32 to vector<8x512xf32>
    %55 = arith.minimumf %54, %53 : vector<8x512xf32>
    %56 = arith.mulf %49, %55 : vector<8x512xf32>
    %cst_28 = arith.constant 0.166666672 : f32
    %57 = vector.broadcast %cst_28 : f32 to vector<8x512xf32>
    %58 = arith.mulf %56, %57 : vector<8x512xf32>
    %c0_29 = arith.constant 0 : index
    %c0_30 = arith.constant 0 : index
    %59 = vector.load %arg7[%c0_29, %c0_30] : memref<8x512xf32, #tpu.memory_space<vmem>>, vector<8x512xf32>
    tpu.vector_store %arg7[%c0_29, %c0_30], %58 {strides = array<i32>} : memref<8x512xf32, #tpu.memory_space<vmem>>, vector<8x512xf32>,
    return
  }
  func.func @transform_0(%arg0: i32) -> (i32, i32) {
    %c0_i32 = arith.constant 0 : i32
    %c0_i32_0 = arith.constant 0 : i32
    return %c0_i32, %arg0 : i32, i32
  }
  func.func @transform_1(%arg0: i32) -> (i32, i32) {
    %c0_i32 = arith.constant 0 : i32
    %c0_i32_0 = arith.constant 0 : i32
    %c0_i32_1 = arith.constant 0 : i32
    return %c0_i32, %c0_i32_0 : i32, i32
  }
  func.func @transform_2(%arg0: i32) -> (i32, i32) {
    %c0_i32 = arith.constant 0 : i32
    %c0_i32_0 = arith.constant 0 : i32
    %c0_i32_1 = arith.constant 0 : i32
    return %c0_i32, %c0_i32_0 : i32, i32
  }
  func.func @transform_3(%arg0: i32) -> (i32, i32) {
    %c0_i32 = arith.constant 0 : i32
    %c0_i32_0 = arith.constant 0 : i32
    %c0_i32_1 = arith.constant 0 : i32
    return %c0_i32, %c0_i32_0 : i32, i32
  }
  func.func @transform_4(%arg0: i32) -> (i32, i32) {
    %c0_i32 = arith.constant 0 : i32
    %c0_i32_0 = arith.constant 0 : i32
    %c0_i32_1 = arith.constant 0 : i32
    return %c0_i32, %c0_i32_0 : i32, i32
  }
  func.func @transform_5(%arg0: i32) -> (i32, i32) {
    %c0_i32 = arith.constant 0 : i32
    %c0_i32_0 = arith.constant 0 : i32
    %c0_i32_1 = arith.constant 0 : i32
    return %c0_i32, %c0_i32_0 : i32, i32
  }
  func.func @transform_6(%arg0: i32) -> (i32, i32) {
    %c0_i32 = arith.constant 0 : i32
    %c0_i32_0 = arith.constant 0 : i32
    return %c0_i32, %arg0 : i32, i32
  }
}

</mosaic_0001>

<llo_original>
// kernel: tpu_custom_call.1
$region0: #{tpu_custom_call.1}
  #allocation0 [shape = 'u32[]', space=smem, size = 0x4, offset = 0x4, fixed_abs, tag = 'smem constant byte address 0x4 - core index']
  #allocation1 [shape = 'u32[144,128]{1,0:T(1,128)}', space=vmem, size = 0x12000, scoped, tag = 'internal scratch']
  %s0 = inlined_call_operand.hbm [shape: f32[8,512], index: 0, kind: input, shape index: {}]
  %s1 = inlined_call_operand.hbm [shape: f32[72,512], index: 1, kind: input, shape index: {}]
  %s2 = inlined_call_operand.vmem [shape: f32[8,72], index: 2, kind: input, shape index: {}]
  %s3 = inlined_call_operand.vmem [shape: f32[8,1], index: 3, kind: input, shape index: {}]
  %s4 = inlined_call_operand.vmem [shape: f32[8,1], index: 4, kind: input, shape index: {}]
  %s5 = inlined_call_operand.vmem [shape: f32[8,72], index: 5, kind: input, shape index: {}]
  %s6 = inlined_call_operand.hbm [shape: f32[8,512], index: 6, kind: output, shape index: {}]
  %s7 = sld [smem:[#allocation0]]
  $region42: #{tpu_custom_call.1} parent=0
    _
  %s9 = ssub.s32 1, %s7
  %s10 = scalar_select 0, %s9, %s7
  $region1: #{tpu_custom_call.1} parent=0
    #allocation2 [shape = 'u8[16384]{0}', space=vmem, size = 0x4000, scoped, tag = 'input window, operand 0, single buffered']
    #allocation3 [shape = 's32[1]{0}', space=sflag, size = 0x4, scoped, tag = 'scoped memory for tpu_custom_call.1']
    #allocation4 [shape = 's32[1]{0}', space=sflag, size = 0x4, scoped, tag = 'scoped memory for tpu_custom_call.1']
    #allocation5 [shape = 'u8[147456]{0}', space=vmem, size = 0x24000, scoped, tag = 'input window, operand 1, single buffered']
    #allocation6 [shape = 's32[1]{0}', space=sflag, size = 0x4, scoped, tag = 'scoped memory for tpu_custom_call.1']
    #allocation7 [shape = 'u8[16384]{0}', space=vmem, size = 0x4000, scoped, tag = 'output window, operand 0, single buffered']
    %11 = vsyncpa [#allocation3], 0
    %12 = vsyncpa [#allocation6], 0
    %13 = vsyncpa [#allocation4], 0
    // Predicated region
    $region2: #{tpu_custom_call.1} parent=1 // pred_check
      _
    $region3: #{tpu_custom_call.1} parent=1 // pred_check_branch
      %15 = sbr.rel (0) target = $region5
    $region4: #{tpu_custom_call.1} parent=1 // pred_region
      %s17 = ssub.s32 512, 512
      %18 = vsyncadd [#allocation3], %s17
      %s20 = sshll.u32 [#allocation2], 4
      %s21 = int_to_ptr.vmem [resolvable:$true] %s20
      %23 = dma.hbm_to_vmem [thread:$0]  %s0, 512, %s21, [#allocation3]
    $region5: #{tpu_custom_call.1} parent=1 // pred_fallthru
      _
    // Predicated region
    $region6: #{tpu_custom_call.1} parent=1 // pred_check
      _
    $region7: #{tpu_custom_call.1} parent=1 // pred_check_branch
      %25 = sbr.rel (0) target = $region9
    $region8: #{tpu_custom_call.1} parent=1 // pred_region
      %s27 = ssub.s32 4608, 4608
      %28 = vsyncadd [#allocation6], %s27
      %s29 = sshll.u32 [#allocation5], 4
      %s30 = int_to_ptr.vmem [resolvable:$true] %s29
      %35 = dma.hbm_to_vmem [thread:$0]  %s1, 4608, %s30, [#allocation6], 512, 512, 32
    $region9: #{tpu_custom_call.1} parent=1 // pred_fallthru
      _
    // Predicated region
    $region10: #{tpu_custom_call.1} parent=1 // pred_check
      _
    $region11: #{tpu_custom_call.1} parent=1 // pred_check_branch
      %37 = sbr.rel (0) target = $region13
    $region12: #{tpu_custom_call.1} parent=1 // pred_region
      _
    $region13: #{tpu_custom_call.1} parent=1 // pred_fallthru
      _
    // Predicated region
    $region14: #{tpu_custom_call.1} parent=1 // pred_check
      _
    $region15: #{tpu_custom_call.1} parent=1 // pred_check_branch
      %39 = sbr.rel (0) target = $region17
    $region16: #{tpu_custom_call.1} parent=1 // pred_region
      _
    $region17: #{tpu_custom_call.1} parent=1 // pred_fallthru
      _
    // Predicated region
    $region18: #{tpu_custom_call.1} parent=1 // pred_check
      _
    $region19: #{tpu_custom_call.1} parent=1 // pred_check_branch
      %41 = sbr.rel (0) target = $region21
    $region20: #{tpu_custom_call.1} parent=1 // pred_region
      _
    $region21: #{tpu_custom_call.1} parent=1 // pred_fallthru
      _
    // Predicated region
    $region22: #{tpu_custom_call.1} parent=1 // pred_check
      _
    $region23: #{tpu_custom_call.1} parent=1 // pred_check_branch
      %43 = sbr.rel (0) target = $region25
    $region24: #{tpu_custom_call.1} parent=1 // pred_region
      _
    $region25: #{tpu_custom_call.1} parent=1 // pred_fallthru
      _
    // Predicated region
    $region26: #{tpu_custom_call.1} parent=1 // pred_check
      _
    $region27: #{tpu_custom_call.1} parent=1 // pred_check_branch
      %45 = sbr.rel (0) target = $region29
    $region28: #{tpu_custom_call.1} parent=1 // pred_region
      %46 = dma.done [#allocation3], 512
    $region29: #{tpu_custom_call.1} parent=1 // pred_fallthru
      _
    // Predicated region
    $region30: #{tpu_custom_call.1} parent=1 // pred_check
      _
    $region31: #{tpu_custom_call.1} parent=1 // pred_check_branch
      %48 = sbr.rel (0) target = $region33
    $region32: #{tpu_custom_call.1} parent=1 // pred_region
      %49 = dma.done [#allocation6], 4608
    $region33: #{tpu_custom_call.1} parent=1 // pred_fallthru
      _
    %v50 = vld [vmem:[#allocation2] sm:$0xff]
    %v51 = vld [vmem:[#allocation2 + $0x8] sm:$0xff]
    %v52 = vld [vmem:[#allocation2 + $0x10] sm:$0xff]
    %v53 = vld [vmem:[#allocation2 + $0x18] sm:$0xff]
    %v54 = vld [vmem:[#allocation5] sm:$0xff]
    %v55 = vld [vmem:[#allocation5 + $0x8] sm:$0xff]
    %v56 = vld [vmem:[#allocation5 + $0x10] sm:$0xff]
    %v57 = vld [vmem:[#allocation5 + $0x18] sm:$0xff]
    %v58 = vld [vmem:[#allocation5 + $0x20] sm:$0xff]
    %v59 = vld [vmem:[#allocation5 + $0x28] sm:$0xff]
    %v60 = vld [vmem:[#allocation5 + $0x30] sm:$0xff]
    %v61 = vld [vmem:[#allocation5 + $0x38] sm:$0xff]
    %v62 = vld [vmem:[#allocation5 + $0x40] sm:$0xff]
    %v63 = vld [vmem:[#allocation5 + $0x48] sm:$0xff]
    %v64 = vld [vmem:[#allocation5 + $0x50] sm:$0xff]
    %v65 = vld [vmem:[#allocation5 + $0x58] sm:$0xff]
    %v66 = vld [vmem:[#allocation5 + $0x60] sm:$0xff]
    %v67 = vld [vmem:[#allocation5 + $0x68] sm:$0xff]
    %v68 = vld [vmem:[#allocation5 + $0x70] sm:$0xff]
    %v69 = vld [vmem:[#allocation5 + $0x78] sm:$0xff]
    %v70 = vld [vmem:[#allocation5 + $0x80] sm:$0xff]
    %v71 = vld [vmem:[#allocation5 + $0x88] sm:$0xff]
    %v72 = vld [vmem:[#allocation5 + $0x90] sm:$0xff]
    %v73 = vld [vmem:[#allocation5 + $0x98] sm:$0xff]
    %v74 = vld [vmem:[#allocation5 + $0xa0] sm:$0xff]
    %v75 = vld [vmem:[#allocation5 + $0xa8] sm:$0xff]
    %v76 = vld [vmem:[#allocation5 + $0xb0] sm:$0xff]
    %v77 = vld [vmem:[#allocation5 + $0xb8] sm:$0xff]
    %v78 = vld [vmem:[#allocation5 + $0xc0] sm:$0xff]
    %v79 = vld [vmem:[#allocation5 + $0xc8] sm:$0xff]
    %v80 = vld [vmem:[#allocation5 + $0xd0] sm:$0xff]
    %v81 = vld [vmem:[#allocation5 + $0xd8] sm:$0xff]
    %v82 = vld [vmem:[#allocation5 + $0xe0] sm:$0xff]
    %v83 = vld [vmem:[#allocation5 + $0xe8] sm:$0xff]
    %v84 = vld [vmem:[#allocation5 + $0xf0] sm:$0xff]
    %v85 = vld [vmem:[#allocation5 + $0xf8] sm:$0xff]
    %v86 = vld [vmem:[#allocation5 + $0x100] sm:$0xff]
    %v87 = vld [vmem:[#allocation5 + $0x108] sm:$0xff]
    %v88 = vld [vmem:[#allocation5 + $0x110] sm:$0xff]
    %v89 = vld [vmem:[#allocation5 + $0x118] sm:$0xff]
    %v90 = vld [vmem:[%s2] sm:$0xff]
    %91 = vrot.lane.b32.xlu0 %v50, 17
    %v92 = vpop.permute.xlu0 %91
    %93 = vrot.lane.b32.xlu0 %v51, 17
    %v94 = vpop.permute.xlu0 %93
    %95 = vrot.lane.b32.xlu0 %v52, 17
    %v96 = vpop.permute.xlu0 %95
    %97 = vrot.lane.b32.xlu0 %v53, 17
    %v98 = vpop.permute.xlu0 %97
    %v99 = vlaneseq
    %v100 = vand.u32 %v99, 127
    %vm101 = vcmp.lt.s32.totalorder %v100, 17
    %v102 = vsel %vm101, %v96, %v98
    %v103 = vsel %vm101, %v94, %v96
    %v104 = vsel %vm101, %v92, %v94
    %v105 = vsel %vm101, %v98, %v92
    %106 = vrot.lane.b32.xlu0 %v50, 16
    %v107 = vpop.permute.xlu0 %106
    %108 = vrot.lane.b32.xlu0 %v51, 16
    %v109 = vpop.permute.xlu0 %108
    %110 = vrot.lane.b32.xlu0 %v52, 16
    %v111 = vpop.permute.xlu0 %110
    %112 = vrot.lane.b32.xlu0 %v53, 16
    %v113 = vpop.permute.xlu0 %112
    %vm114 = vcmp.lt.s32.totalorder %v100, 16
    %v115 = vsel %vm114, %v111, %v113
    %v116 = vsel %vm114, %v109, %v111
    %v117 = vsel %vm114, %v107, %v109
    %v118 = vsel %vm114, %v113, %v107
    %119 = vrot.lane.b32.xlu0 %v50, 15
    %v120 = vpop.permute.xlu0 %119
    %121 = vrot.lane.b32.xlu0 %v51, 15
    %v122 = vpop.permute.xlu0 %121
    %123 = vrot.lane.b32.xlu0 %v52, 15
    %v124 = vpop.permute.xlu0 %123
    %125 = vrot.lane.b32.xlu0 %v53, 15
    %v126 = vpop.permute.xlu0 %125
    %vm127 = vcmp.lt.s32.totalorder %v100, 15
    %v128 = vsel %vm127, %v124, %v126
    %v129 = vsel %vm127, %v122, %v124
    %v130 = vsel %vm127, %v120, %v122
    %v131 = vsel %vm127, %v126, %v120
    %132 = vrot.lane.b32.xlu0 %v50, 1
    %v133 = vpop.permute.xlu0 %132
    %134 = vrot.lane.b32.xlu0 %v51, 1
    %v135 = vpop.permute.xlu0 %134
    %136 = vrot.lane.b32.xlu0 %v52, 1
    %v137 = vpop.permute.xlu0 %136
    %138 = vrot.lane.b32.xlu0 %v53, 1
    %v139 = vpop.permute.xlu0 %138
    %vm140 = vcmp.lt.s32.totalorder %v100, 1
    %v141 = vsel %vm140, %v137, %v139
    %v142 = vsel %vm140, %v135, %v137
    %v143 = vsel %vm140, %v133, %v135
    %v144 = vsel %vm140, %v139, %v133
    %145 = vrot.lane.b32.xlu0 %v50, 127
    %v146 = vpop.permute.xlu0 %145
    %147 = vrot.lane.b32.xlu0 %v51, 127
    %v148 = vpop.permute.xlu0 %147
    %149 = vrot.lane.b32.xlu0 %v52, 127
    %v150 = vpop.permute.xlu0 %149
    %151 = vrot.lane.b32.xlu0 %v53, 127
    %v152 = vpop.permute.xlu0 %151
    %vm153 = vcmp.lt.s32.totalorder %v100, 127
    %v154 = vsel %vm153, %v150, %v152
    %v155 = vsel %vm153, %v148, %v150
    %v156 = vsel %vm153, %v146, %v148
    %v157 = vsel %vm153, %v152, %v146
    %158 = vrot.lane.b32.xlu0 %v50, 113
    %v159 = vpop.permute.xlu0 %158
    %160 = vrot.lane.b32.xlu0 %v51, 113
    %v161 = vpop.permute.xlu0 %160
    %162 = vrot.lane.b32.xlu0 %v52, 113
    %v163 = vpop.permute.xlu0 %162
    %164 = vrot.lane.b32.xlu0 %v53, 113
    %v165 = vpop.permute.xlu0 %164
    %vm166 = vcmp.lt.s32.totalorder %v100, 113
    %v167 = vsel %vm166, %v163, %v165
    %v168 = vsel %vm166, %v161, %v163
    %v169 = vsel %vm166, %v159, %v161
    %v170 = vsel %vm166, %v165, %v159
    %171 = vrot.lane.b32.xlu0 %v50, 112
    %v172 = vpop.permute.xlu0 %171
    %173 = vrot.lane.b32.xlu0 %v51, 112
    %v174 = vpop.permute.xlu0 %173
    %175 = vrot.lane.b32.xlu0 %v52, 112
    %v176 = vpop.permute.xlu0 %175
    %177 = vrot.lane.b32.xlu0 %v53, 112
    %v178 = vpop.permute.xlu0 %177
    %vm179 = vcmp.lt.s32.totalorder %v100, 112
    %v180 = vsel %vm179, %v176, %v178
    %v181 = vsel %vm179, %v174, %v176
    %v182 = vsel %vm179, %v172, %v174
    %v183 = vsel %vm179, %v178, %v172
    %184 = vrot.lane.b32.xlu0 %v50, 111
    %v185 = vpop.permute.xlu0 %184
    %186 = vrot.lane.b32.xlu0 %v51, 111
    %v187 = vpop.permute.xlu0 %186
    %188 = vrot.lane.b32.xlu0 %v52, 111
    %v189 = vpop.permute.xlu0 %188
    %190 = vrot.lane.b32.xlu0 %v53, 111
    %v191 = vpop.permute.xlu0 %190
    %vm192 = vcmp.lt.s32.totalorder %v100, 111
    %v193 = vsel %vm192, %v189, %v191
    %v194 = vsel %vm192, %v187, %v189
    %v195 = vsel %vm192, %v185, %v187
    %v196 = vsel %vm192, %v191, %v185
    %v197 = vmul.f32 %v105, %v54
    %v198 = vmul.f32 %v104, %v55
    %v199 = vmul.f32 %v103, %v56
    %v200 = vmul.f32 %v102, %v57
    %v201 = vmul.f32 %v118, %v58
    %v202 = vmul.f32 %v117, %v59
    %v203 = vmul.f32 %v116, %v60
    %v204 = vmul.f32 %v115, %v61
    %v205 = vmul.f32 %v131, %v62
    %v206 = vmul.f32 %v130, %v63
    %v207 = vmul.f32 %v129, %v64
    %v208 = vmul.f32 %v128, %v65
    %v209 = vmul.f32 %v144, %v66
    %v210 = vmul.f32 %v143, %v67
    %v211 = vmul.f32 %v142, %v68
    %v212 = vmul.f32 %v141, %v69
    %v213 = vmul.f32 %v50, %v70
    %v214 = vmul.f32 %v51, %v71
    %v215 = vmul.f32 %v52, %v72
    %v216 = vmul.f32 %v53, %v73
    %v217 = vmul.f32 %v156, %v74
    %v218 = vmul.f32 %v155, %v75
    %v219 = vmul.f32 %v154, %v76
    %v220 = vmul.f32 %v157, %v77
    %v221 = vmul.f32 %v169, %v78
    %v222 = vmul.f32 %v168, %v79
    %v223 = vmul.f32 %v167, %v80
    %v224 = vmul.f32 %v170, %v81
    %v225 = vmul.f32 %v182, %v82
    %v226 = vmul.f32 %v181, %v83
    %v227 = vmul.f32 %v180, %v84
    %v228 = vmul.f32 %v183, %v85
    %v229 = vmul.f32 %v195, %v86
    %v230 = vmul.f32 %v194, %v87
    %v231 = vmul.f32 %v193, %v88
    %v232 = vmul.f32 %v196, %v89
    %vm233 = vcmask 588800
    %v235 = vsel %vm233, %v90, 0
    %237 = vmatprep.subr.mxu0 %v198
    %238 = vmatpush1.msra.mxu0 %v197
    %239 = vmatprep.subr.mxu0 %v202
    %240 = vmatpush1.msra.mxu0 %v201
    %241 = vmatprep.subr.mxu0 %v206
    %242 = vmatpush1.msra.mxu0 %v205
    %243 = vmatprep.subr.mxu0 %v210
    %244 = vmatpush1.msra.mxu0 %v209
    %245 = vmatprep.subr.mxu0 %v214
    %246 = vmatpush1.msra.mxu0 %v213
    %247 = vmatprep.subr.mxu0 %v218
    %248 = vmatpush1.msra.mxu0 %v217
    %249 = vmatprep.subr.mxu0 %v222
    %250 = vmatpush1.msra.mxu0 %v221
    %251 = vmatprep.subr.mxu0 %v226
    %252 = vmatpush1.msra.mxu0 %v225
    %253 = vmatprep.subr.mxu0 %v230
    %254 = vmatpush1.msra.mxu0 %v229
    %255 = vmatprep.subr.mxu0 0.0
    %256 = vmatpush1.msra.mxu0 0.0
    %257 = vmatprep.subr.mxu0 0.0
    %258 = vmatpush1.msra.mxu0 0.0
    %259 = vmatprep.subr.mxu0 0.0
    %260 = vmatpush1.msra.mxu0 0.0
    %261 = vmatprep.subr.mxu0 0.0
    %262 = vmatpush1.msra.mxu0 0.0
    %263 = vmatprep.subr.mxu0 0.0
    %264 = vmatpush1.msra.mxu0 0.0
    %265 = vmatprep.subr.mxu0 0.0
    %266 = vmatpush1.msra.mxu0 0.0
    %267 = vmatprep.subr.mxu0 0.0
    %268 = vmatpush1.msra.mxu0 0.0
    %269 = vmatprep.subr.mxu0 0.0
    %270 = vmatpush1.msra.mxu0 0.0
    %271 = vmatprep.subr.mxu0 0.0
    %272 = vmatpush1.msra.mxu0 0.0
    %273 = vmatprep.subr.mxu0 0.0
    %274 = vmatpush1.msra.mxu0 0.0
    %275 = vmatprep.subr.mxu0 0.0
    %276 = vmatpush1.msra.mxu0 0.0
    %277 = vmatprep.subr.mxu0 0.0
    %278 = vmatpush1.msra.mxu0 0.0
    %279 = vmatprep.subr.mxu0 0.0
    %280 = vmatpush1.msra.mxu0 0.0
    %281 = vmatprep.subr.mxu0 0.0
    %282 = vmatpush1.msra.mxu0 0.0
    %283 = vmatprep.subr.mxu0 0.0
    %284 = vmatpush1.msra.mxu0 0.0
    %285 = vmatprep.subr.mxu0 0.0
    %286 = vmatpush1.msra.mxu0 0.0
    %287 = vmatprep.subr.mxu0 0.0
    %288 = vmatpush1.msra.mxu0 0.0
    %289 = vmatprep.subr.mxu0 0.0
    %290 = vmatpush1.msra.mxu0 0.0
    %291 = vmatprep.subr.mxu0 0.0
    %292 = vmatpush1.msra.mxu0 0.0
    %293 = vmatprep.subr.mxu0 0.0
    %294 = vmatpush1.msra.mxu0 0.0
    %295 = vmatprep.subr.mxu0 0.0
    %296 = vmatpush1.msra.mxu0 0.0
    %297 = vmatprep.subr.mxu0 0.0
    %298 = vmatpush1.msra.mxu0 0.0
    %299 = vmatprep.subr.mxu0 0.0
    %300 = vmatpush1.msra.mxu0 0.0
    %301 = vmatprep.mubr.f32.mxu0 0.0
    %302 = vmatmul.mubr.f32.gmra.mrb[0].mxu0 %v235
    %v303 = vpop.f32.mrb[0].mxu0
    %v304 = vadd.f32 0.0, %v303
    %v305 = vpop.f32.mrb[0].mxu0
    %v306 = vadd.f32 0.0, %v305
    %307 = vdwg.mxu0
    %308 = vmatprep.subr.mxu0 %v200
    %309 = vmatpush1.msra.mxu0 %v199
    %310 = vmatprep.subr.mxu0 %v204
    %311 = vmatpush1.msra.mxu0 %v203
    %312 = vmatprep.subr.mxu0 %v208
    %313 = vmatpush1.msra.mxu0 %v207
    %314 = vmatprep.subr.mxu0 %v212
    %315 = vmatpush1.msra.mxu0 %v211
    %316 = vmatprep.subr.mxu0 %v216
    %317 = vmatpush1.msra.mxu0 %v215
    %318 = vmatprep.subr.mxu0 %v220
    %319 = vmatpush1.msra.mxu0 %v219
    %320 = vmatprep.subr.mxu0 %v224
    %321 = vmatpush1.msra.mxu0 %v223
    %322 = vmatprep.subr.mxu0 %v228
    %323 = vmatpush1.msra.mxu0 %v227
    %324 = vmatprep.subr.mxu0 %v232
    %325 = vmatpush1.msra.mxu0 %v231
    %326 = vmatprep.subr.mxu0 0.0
    %327 = vmatpush1.msra.mxu0 0.0
    %328 = vmatprep.subr.mxu0 0.0
    %329 = vmatpush1.msra.mxu0 0.0
    %330 = vmatprep.subr.mxu0 0.0
    %331 = vmatpush1.msra.mxu0 0.0
    %332 = vmatprep.subr.mxu0 0.0
    %333 = vmatpush1.msra.mxu0 0.0
    %334 = vmatprep.subr.mxu0 0.0
    %335 = vmatpush1.msra.mxu0 0.0
    %336 = vmatprep.subr.mxu0 0.0
    %337 = vmatpush1.msra.mxu0 0.0
    %338 = vmatprep.subr.mxu0 0.0
    %339 = vmatpush1.msra.mxu0 0.0
    %340 = vmatprep.subr.mxu0 0.0
    %341 = vmatpush1.msra.mxu0 0.0
    %342 = vmatprep.subr.mxu0 0.0
    %343 = vmatpush1.msra.mxu0 0.0
    %344 = vmatprep.subr.mxu0 0.0
    %345 = vmatpush1.msra.mxu0 0.0
    %346 = vmatprep.subr.mxu0 0.0
    %347 = vmatpush1.msra.mxu0 0.0
    %348 = vmatprep.subr.mxu0 0.0
    %349 = vmatpush1.msra.mxu0 0.0
    %350 = vmatprep.subr.mxu0 0.0
    %351 = vmatpush1.msra.mxu0 0.0
    %352 = vmatprep.subr.mxu0 0.0
    %353 = vmatpush1.msra.mxu0 0.0
    %354 = vmatprep.subr.mxu0 0.0
    %355 = vmatpush1.msra.mxu0 0.0
    %356 = vmatprep.subr.mxu0 0.0
    %357 = vmatpush1.msra.mxu0 0.0
    %358 = vmatprep.subr.mxu0 0.0
    %359 = vmatpush1.msra.mxu0 0.0
    %360 = vmatprep.subr.mxu0 0.0
    %361 = vmatpush1.msra.mxu0 0.0
    %362 = vmatprep.subr.mxu0 0.0
    %363 = vmatpush1.msra.mxu0 0.0
    %364 = vmatprep.subr.mxu0 0.0
    %365 = vmatpush1.msra.mxu0 0.0
    %366 = vmatprep.subr.mxu0 0.0
    %367 = vmatpush1.msra.mxu0 0.0
    %368 = vmatprep.subr.mxu0 0.0
    %369 = vmatpush1.msra.mxu0 0.0
    %370 = vmatprep.subr.mxu0 0.0
    %371 = vmatpush1.msra.mxu0 0.0
    %372 = vmatprep.mubr.f32.mxu0 0.0
    %373 = vmatmul.mubr.f32.gmra.mrb[0].mxu0 %v235
    %v374 = vpop.f32.mrb[0].mxu0
    %v375 = vadd.f32 0.0, %v374
    %v376 = vpop.f32.mrb[0].mxu0
    %v377 = vadd.f32 0.0, %v376
    %378 = vdwg.mxu0
    %v379 = vrot.slane %v304, 4
    %v380 = vadd.f32 %v304, %v379
    %v381 = vrot.slane %v380, 2
    %v382 = vadd.f32 %v380, %v381
    %v383 = vrot.slane %v382, 1
    %v384 = vadd.f32 %v382, %v383
    %v385 = vrot.slane %v306, 4
    %v386 = vadd.f32 %v306, %v385
    %v387 = vrot.slane %v386, 2
    %v388 = vadd.f32 %v386, %v387
    %v389 = vrot.slane %v388, 1
    %v390 = vadd.f32 %v388, %v389
    %v391 = vrot.slane %v375, 4
    %v392 = vadd.f32 %v375, %v391
    %v393 = vrot.slane %v392, 2
    %v394 = vadd.f32 %v392, %v393
    %v395 = vrot.slane %v394, 1
    %v396 = vadd.f32 %v394, %v395
    %v397 = vrot.slane %v377, 4
    %v398 = vadd.f32 %v377, %v397
    %v399 = vrot.slane %v398, 2
    %v400 = vadd.f32 %v398, %v399
    %v401 = vrot.slane %v400, 1
    %v402 = vadd.f32 %v400, %v401
    %v403 = vmul.f32 %v384, 0.25
    %v404 = vmul.f32 %v390, 0.25
    %v405 = vmul.f32 %v396, 0.25
    %v406 = vmul.f32 %v402, 0.25
    %v407 = vmul.f32 %v304, %v304
    %v408 = vmul.f32 %v306, %v306
    %v409 = vmul.f32 %v375, %v375
    %v410 = vmul.f32 %v377, %v377
    %v411 = vrot.slane %v407, 4
    %v412 = vadd.f32 %v407, %v411
    %v413 = vrot.slane %v412, 2
    %v414 = vadd.f32 %v412, %v413
    %v415 = vrot.slane %v414, 1
    %v416 = vadd.f32 %v414, %v415
    %v417 = vrot.slane %v408, 4
    %v418 = vadd.f32 %v408, %v417
    %v419 = vrot.slane %v418, 2
    %v420 = vadd.f32 %v418, %v419
    %v421 = vrot.slane %v420, 1
    %v422 = vadd.f32 %v420, %v421
    %v423 = vrot.slane %v409, 4
    %v424 = vadd.f32 %v409, %v423
    %v425 = vrot.slane %v424, 2
    %v426 = vadd.f32 %v424, %v425
    %v427 = vrot.slane %v426, 1
    %v428 = vadd.f32 %v426, %v427
    %v429 = vrot.slane %v410, 4
    %v430 = vadd.f32 %v410, %v429
    %v431 = vrot.slane %v430, 2
    %v432 = vadd.f32 %v430, %v431
    %v433 = vrot.slane %v432, 1
    %v434 = vadd.f32 %v432, %v433
    %v435 = vmul.f32 %v416, 0.25
    %v436 = vmul.f32 %v422, 0.25
    %v437 = vmul.f32 %v428, 0.25
    %v438 = vmul.f32 %v434, 0.25
    %v439 = vmul.f32 %v403, %v403
    %v440 = vmul.f32 %v404, %v404
    %v441 = vmul.f32 %v405, %v405
    %v442 = vmul.f32 %v406, %v406
    %v443 = vsub.f32 %v435, %v439
    %v444 = vsub.f32 %v436, %v440
    %v445 = vsub.f32 %v437, %v441
    %v446 = vsub.f32 %v438, %v442
    %v447 = vsub.f32 %v304, %v403
    %v448 = vsub.f32 %v306, %v404
    %v449 = vsub.f32 %v375, %v405
    %v450 = vsub.f32 %v377, %v406
    %v451 = vadd.f32 %v443, 1e-06
    %v452 = vadd.f32 %v444, 1e-06
    %v453 = vadd.f32 %v445, 1e-06
    %v454 = vadd.f32 %v446, 1e-06
    %v455 = vrsqrt.pop %v451
    %v456 = vrsqrt.pop %v452
    %v457 = vrsqrt.pop %v453
    %v458 = vrsqrt.pop %v454
    %v459 = vmul.f32 %v447, %v455
    %v460 = vmul.f32 %v448, %v456
    %v461 = vmul.f32 %v449, %v457
    %v462 = vmul.f32 %v450, %v458
    %v463 = vld [vmem:[%s3] sm:$0xff]
    %465 = vset.pattern.permute.xlu0 0
    %466 = vperm.xlu0 %465, %v463
    %v467 = vpop.permute.xlu0 %466
    %v469 = vmul.f32 %v459, %v467
    %v470 = vmul.f32 %v460, %v467
    %v471 = vmul.f32 %v461, %v467
    %v472 = vmul.f32 %v462, %v467
    %v473 = vld [vmem:[%s4] sm:$0xff]
    %475 = vset.pattern.permute.xlu0 0
    %476 = vperm.xlu0 %475, %v473
    %v477 = vpop.permute.xlu0 %476
    %v479 = vadd.f32 %v469, %v477
    %v480 = vadd.f32 %v470, %v477
    %v481 = vadd.f32 %v471, %v477
    %v482 = vadd.f32 %v472, %v477
    %v483 = vld [vmem:[%s5] sm:$0xff]
    %484 = vrot.lane.b32.xlu0 %v479, 17
    %v485 = vpop.permute.xlu0 %484
    %486 = vrot.lane.b32.xlu0 %v480, 17
    %v487 = vpop.permute.xlu0 %486
    %488 = vrot.lane.b32.xlu0 %v481, 17
    %v489 = vpop.permute.xlu0 %488
    %490 = vrot.lane.b32.xlu0 %v482, 17
    %v491 = vpop.permute.xlu0 %490
    %v492 = vsel %vm101, %v489, %v491
    %v493 = vsel %vm101, %v487, %v489
    %v494 = vsel %vm101, %v485, %v487
    %v495 = vsel %vm101, %v491, %v485
    %496 = vrot.lane.b32.xlu0 %v479, 16
    %v497 = vpop.permute.xlu0 %496
    %498 = vrot.lane.b32.xlu0 %v480, 16
    %v499 = vpop.permute.xlu0 %498
    %500 = vrot.lane.b32.xlu0 %v481, 16
    %v501 = vpop.permute.xlu0 %500
    %502 = vrot.lane.b32.xlu0 %v482, 16
    %v503 = vpop.permute.xlu0 %502
    %v504 = vsel %vm114, %v501, %v503
    %v505 = vsel %vm114, %v499, %v501
    %v506 = vsel %vm114, %v497, %v499
    %v507 = vsel %vm114, %v503, %v497
    %508 = vrot.lane.b32.xlu0 %v479, 15
    %v509 = vpop.permute.xlu0 %508
    %510 = vrot.lane.b32.xlu0 %v480, 15
    %v511 = vpop.permute.xlu0 %510
    %512 = vrot.lane.b32.xlu0 %v481, 15
    %v513 = vpop.permute.xlu0 %512
    %514 = vrot.lane.b32.xlu0 %v482, 15
    %v515 = vpop.permute.xlu0 %514
    %v516 = vsel %vm127, %v513, %v515
    %v517 = vsel %vm127, %v511, %v513
    %v518 = vsel %vm127, %v509, %v511
    %v519 = vsel %vm127, %v515, %v509
    %520 = vrot.lane.b32.xlu0 %v479, 1
    %v521 = vpop.permute.xlu0 %520
    %522 = vrot.lane.b32.xlu0 %v480, 1
    %v523 = vpop.permute.xlu0 %522
    %524 = vrot.lane.b32.xlu0 %v481, 1
    %v525 = vpop.permute.xlu0 %524
    %526 = vrot.lane.b32.xlu0 %v482, 1
    %v527 = vpop.permute.xlu0 %526
    %v528 = vsel %vm140, %v525, %v527
    %v529 = vsel %vm140, %v523, %v525
    %v530 = vsel %vm140, %v521, %v523
    %v531 = vsel %vm140, %v527, %v521
    %532 = vrot.lane.b32.xlu0 %v479, 127
    %v533 = vpop.permute.xlu0 %532
    %534 = vrot.lane.b32.xlu0 %v480, 127
    %v535 = vpop.permute.xlu0 %534
    %536 = vrot.lane.b32.xlu0 %v481, 127
    %v537 = vpop.permute.xlu0 %536
    %538 = vrot.lane.b32.xlu0 %v482, 127
    %v539 = vpop.permute.xlu0 %538
    %v540 = vsel %vm153, %v537, %v539
    %v541 = vsel %vm153, %v535, %v537
    %v542 = vsel %vm153, %v533, %v535
    %v543 = vsel %vm153, %v539, %v533
    %544 = vrot.lane.b32.xlu0 %v479, 113
    %v545 = vpop.permute.xlu0 %544
    %546 = vrot.lane.b32.xlu0 %v480, 113
    %v547 = vpop.permute.xlu0 %546
    %548 = vrot.lane.b32.xlu0 %v481, 113
    %v549 = vpop.permute.xlu0 %548
    %550 = vrot.lane.b32.xlu0 %v482, 113
    %v551 = vpop.permute.xlu0 %550
    %v552 = vsel %vm166, %v549, %v551
    %v553 = vsel %vm166, %v547, %v549
    %v554 = vsel %vm166, %v545, %v547
    %v555 = vsel %vm166, %v551, %v545
    %556 = vrot.lane.b32.xlu0 %v479, 112
    %v557 = vpop.permute.xlu0 %556
    %558 = vrot.lane.b32.xlu0 %v480, 112
    %v559 = vpop.permute.xlu0 %558
    %560 = vrot.lane.b32.xlu0 %v481, 112
    %v561 = vpop.permute.xlu0 %560
    %562 = vrot.lane.b32.xlu0 %v482, 112
    %v563 = vpop.permute.xlu0 %562
    %v564 = vsel %vm179, %v561, %v563
    %v565 = vsel %vm179, %v559, %v561
    %v566 = vsel %vm179, %v557, %v559
    %v567 = vsel %vm179, %v563, %v557
    %568 = vrot.lane.b32.xlu0 %v479, 111
    %v569 = vpop.permute.xlu0 %568
    %570 = vrot.lane.b32.xlu0 %v480, 111
    %v571 = vpop.permute.xlu0 %570
    %572 = vrot.lane.b32.xlu0 %v481, 111
    %v573 = vpop.permute.xlu0 %572
    %574 = vrot.lane.b32.xlu0 %v482, 111
    %v575 = vpop.permute.xlu0 %574
    %v576 = vsel %vm192, %v573, %v575
    %v577 = vsel %vm192, %v571, %v573
    %v578 = vsel %vm192, %v569, %v571
    %v579 = vsel %vm192, %v575, %v569
    %v580 = vmul.f32 %v495, %v54
    %v581 = vmul.f32 %v494, %v55
    %v582 = vmul.f32 %v493, %v56
    %v583 = vmul.f32 %v492, %v57
    %v584 = vmul.f32 %v507, %v58
    %v585 = vmul.f32 %v506, %v59
    %v586 = vmul.f32 %v505, %v60
    %v587 = vmul.f32 %v504, %v61
    %v588 = vmul.f32 %v519, %v62
    %v589 = vmul.f32 %v518, %v63
    %v590 = vmul.f32 %v517, %v64
    %v591 = vmul.f32 %v516, %v65
    %v592 = vmul.f32 %v531, %v66
    %v593 = vmul.f32 %v530, %v67
    %v594 = vmul.f32 %v529, %v68
    %v595 = vmul.f32 %v528, %v69
    %v596 = vmul.f32 %v479, %v70
    %v597 = vmul.f32 %v480, %v71
    %v598 = vmul.f32 %v481, %v72
    %v599 = vmul.f32 %v482, %v73
    %v600 = vmul.f32 %v542, %v74
    %v601 = vmul.f32 %v541, %v75
    %v602 = vmul.f32 %v540, %v76
    %v603 = vmul.f32 %v543, %v77
    %v604 = vmul.f32 %v554, %v78
    %v605 = vmul.f32 %v553, %v79
    %v606 = vmul.f32 %v552, %v80
    %v607 = vmul.f32 %v555, %v81
    %v608 = vmul.f32 %v566, %v82
    %v609 = vmul.f32 %v565, %v83
    %v610 = vmul.f32 %v564, %v84
    %v611 = vmul.f32 %v567, %v85
    %v612 = vmul.f32 %v578, %v86
    %v613 = vmul.f32 %v577, %v87
    %v614 = vmul.f32 %v576, %v88
    %v615 = vmul.f32 %v579, %v89
    %v617 = vsel %vm233, %v483, 0
    %619 = vmatprep.subr.mxu0 %v581
    %620 = vmatpush1.msra.mxu0 %v580
    %621 = vmatprep.subr.mxu0 %v585
    %622 = vmatpush1.msra.mxu0 %v584
    %623 = vmatprep.subr.mxu0 %v589
    %624 = vmatpush1.msra.mxu0 %v588
    %625 = vmatprep.subr.mxu0 %v593
    %626 = vmatpush1.msra.mxu0 %v592
    %627 = vmatprep.subr.mxu0 %v597
    %628 = vmatpush1.msra.mxu0 %v596
    %629 = vmatprep.subr.mxu0 %v601
    %630 = vmatpush1.msra.mxu0 %v600
    %631 = vmatprep.subr.mxu0 %v605
    %632 = vmatpush1.msra.mxu0 %v604
    %633 = vmatprep.subr.mxu0 %v609
    %634 = vmatpush1.msra.mxu0 %v608
    %635 = vmatprep.subr.mxu0 %v613
    %636 = vmatpush1.msra.mxu0 %v612
    %637 = vmatprep.subr.mxu0 0.0
    %638 = vmatpush1.msra.mxu0 0.0
    %639 = vmatprep.subr.mxu0 0.0
    %640 = vmatpush1.msra.mxu0 0.0
    %641 = vmatprep.subr.mxu0 0.0
    %642 = vmatpush1.msra.mxu0 0.0
    %643 = vmatprep.subr.mxu0 0.0
    %644 = vmatpush1.msra.mxu0 0.0
    %645 = vmatprep.subr.mxu0 0.0
    %646 = vmatpush1.msra.mxu0 0.0
    %647 = vmatprep.subr.mxu0 0.0
    %648 = vmatpush1.msra.mxu0 0.0
    %649 = vmatprep.subr.mxu0 0.0
    %650 = vmatpush1.msra.mxu0 0.0
    %651 = vmatprep.subr.mxu0 0.0
    %652 = vmatpush1.msra.mxu0 0.0
    %653 = vmatprep.subr.mxu0 0.0
    %654 = vmatpush1.msra.mxu0 0.0
    %655 = vmatprep.subr.mxu0 0.0
    %656 = vmatpush1.msra.mxu0 0.0
    %657 = vmatprep.subr.mxu0 0.0
    %658 = vmatpush1.msra.mxu0 0.0
    %659 = vmatprep.subr.mxu0 0.0
    %660 = vmatpush1.msra.mxu0 0.0
    %661 = vmatprep.subr.mxu0 0.0
    %662 = vmatpush1.msra.mxu0 0.0
    %663 = vmatprep.subr.mxu0 0.0
    %664 = vmatpush1.msra.mxu0 0.0
    %665 = vmatprep.subr.mxu0 0.0
    %666 = vmatpush1.msra.mxu0 0.0
    %667 = vmatprep.subr.mxu0 0.0
    %668 = vmatpush1.msra.mxu0 0.0
    %669 = vmatprep.subr.mxu0 0.0
    %670 = vmatpush1.msra.mxu0 0.0
    %671 = vmatprep.subr.mxu0 0.0
    %672 = vmatpush1.msra.mxu0 0.0
    %673 = vmatprep.subr.mxu0 0.0
    %674 = vmatpush1.msra.mxu0 0.0
    %675 = vmatprep.subr.mxu0 0.0
    %676 = vmatpush1.msra.mxu0 0.0
    %677 = vmatprep.subr.mxu0 0.0
    %678 = vmatpush1.msra.mxu0 0.0
    %679 = vmatprep.subr.mxu0 0.0
    %680 = vmatpush1.msra.mxu0 0.0
    %681 = vmatprep.subr.mxu0 0.0
    %682 = vmatpush1.msra.mxu0 0.0
    %683 = vmatprep.mubr.f32.mxu0 0.0
    %684 = vmatmul.mubr.f32.gmra.mrb[0].mxu0 %v617
    %v685 = vpop.f32.mrb[0].mxu0
    %v686 = vadd.f32 0.0, %v685
    %v687 = vpop.f32.mrb[0].mxu0
    %v688 = vadd.f32 0.0, %v687
    %689 = vdwg.mxu0
    %690 = vmatprep.subr.mxu0 %v583
    %691 = vmatpush1.msra.mxu0 %v582
    %692 = vmatprep.subr.mxu0 %v587
    %693 = vmatpush1.msra.mxu0 %v586
    %694 = vmatprep.subr.mxu0 %v591
    %695 = vmatpush1.msra.mxu0 %v590
    %696 = vmatprep.subr.mxu0 %v595
    %697 = vmatpush1.msra.mxu0 %v594
    %698 = vmatprep.subr.mxu0 %v599
    %699 = vmatpush1.msra.mxu0 %v598
    %700 = vmatprep.subr.mxu0 %v603
    %701 = vmatpush1.msra.mxu0 %v602
    %702 = vmatprep.subr.mxu0 %v607
    %703 = vmatpush1.msra.mxu0 %v606
    %704 = vmatprep.subr.mxu0 %v611
    %705 = vmatpush1.msra.mxu0 %v610
    %706 = vmatprep.subr.mxu0 %v615
    %707 = vmatpush1.msra.mxu0 %v614
    %708 = vmatprep.subr.mxu0 0.0
    %709 = vmatpush1.msra.mxu0 0.0
    %710 = vmatprep.subr.mxu0 0.0
    %711 = vmatpush1.msra.mxu0 0.0
    %712 = vmatprep.subr.mxu0 0.0
    %713 = vmatpush1.msra.mxu0 0.0
    %714 = vmatprep.subr.mxu0 0.0
    %715 = vmatpush1.msra.mxu0 0.0
    %716 = vmatprep.subr.mxu0 0.0
    %717 = vmatpush1.msra.mxu0 0.0
    %718 = vmatprep.subr.mxu0 0.0
    %719 = vmatpush1.msra.mxu0 0.0
    %720 = vmatprep.subr.mxu0 0.0
    %721 = vmatpush1.msra.mxu0 0.0
    %722 = vmatprep.subr.mxu0 0.0
    %723 = vmatpush1.msra.mxu0 0.0
    %724 = vmatprep.subr.mxu0 0.0
    %725 = vmatpush1.msra.mxu0 0.0
    %726 = vmatprep.subr.mxu0 0.0
    %727 = vmatpush1.msra.mxu0 0.0
    %728 = vmatprep.subr.mxu0 0.0
    %729 = vmatpush1.msra.mxu0 0.0
    %730 = vmatprep.subr.mxu0 0.0
    %731 = vmatpush1.msra.mxu0 0.0
    %732 = vmatprep.subr.mxu0 0.0
    %733 = vmatpush1.msra.mxu0 0.0
    %734 = vmatprep.subr.mxu0 0.0
    %735 = vmatpush1.msra.mxu0 0.0
    %736 = vmatprep.subr.mxu0 0.0
    %737 = vmatpush1.msra.mxu0 0.0
    %738 = vmatprep.subr.mxu0 0.0
    %739 = vmatpush1.msra.mxu0 0.0
    %740 = vmatprep.subr.mxu0 0.0
    %741 = vmatpush1.msra.mxu0 0.0
    %742 = vmatprep.subr.mxu0 0.0
    %743 = vmatpush1.msra.mxu0 0.0
    %744 = vmatprep.subr.mxu0 0.0
    %745 = vmatpush1.msra.mxu0 0.0
    %746 = vmatprep.subr.mxu0 0.0
    %747 = vmatpush1.msra.mxu0 0.0
    %748 = vmatprep.subr.mxu0 0.0
    %749 = vmatpush1.msra.mxu0 0.0
    %750 = vmatprep.subr.mxu0 0.0
    %751 = vmatpush1.msra.mxu0 0.0
    %752 = vmatprep.subr.mxu0 0.0
    %753 = vmatpush1.msra.mxu0 0.0
    %754 = vmatprep.mubr.f32.mxu0 0.0
    %755 = vmatmul.mubr.f32.gmra.mrb[0].mxu0 %v617
    %v756 = vpop.f32.mrb[0].mxu0
    %v757 = vadd.f32 0.0, %v756
    %v758 = vpop.f32.mrb[0].mxu0
    %v759 = vadd.f32 0.0, %v758
    %760 = vdwg.mxu0
    %v761 = vadd.f32 %v686, 3.0
    %v762 = vadd.f32 %v688, 3.0
    %v763 = vadd.f32 %v757, 3.0
    %v764 = vadd.f32 %v759, 3.0
    %v765 = vmax.f32 %v761, 0.0
    %v766 = vmax.f32 %v762, 0.0
    %v767 = vmax.f32 %v763, 0.0
    %v768 = vmax.f32 %v764, 0.0
    %v769 = vmin.f32 %v765, 6.0
    %v770 = vmin.f32 %v766, 6.0
    %v771 = vmin.f32 %v767, 6.0
    %v772 = vmin.f32 %v768, 6.0
    %v773 = vmul.f32 %v686, %v769
    %v774 = vmul.f32 %v688, %v770
    %v775 = vmul.f32 %v757, %v771
    %v776 = vmul.f32 %v759, %v772
    %v777 = vmul.f32 %v773, 0.16666667
    %v778 = vmul.f32 %v774, 0.16666667
    %v779 = vmul.f32 %v775, 0.16666667
    %v780 = vmul.f32 %v776, 0.16666667
    %781 = vst [vmem:[#allocation7] sm:$0xff] %v777
    %782 = vst [vmem:[#allocation7 + $0x8] sm:$0xff] %v778
    %783 = vst [vmem:[#allocation7 + $0x10] sm:$0xff] %v779
    %784 = vst [vmem:[#allocation7 + $0x18] sm:$0xff] %v780
    // Predicated region
    $region34: #{tpu_custom_call.1} parent=1 // pred_check
      _
    $region35: #{tpu_custom_call.1} parent=1 // pred_check_branch
      %786 = sbr.rel (0) target = $region37
    $region36: #{tpu_custom_call.1} parent=1 // pred_region
      %s788 = ssub.s32 512, 512
      %789 = vsyncadd [#allocation4], %s788
      %s791 = sshll.u32 [#allocation7], 4
      %s792 = int_to_ptr.vmem [resolvable:$true] %s791
      %794 = dma.vmem_to_hbm [thread:$0]  %s792, 512, %s6, [#allocation4]
    $region37: #{tpu_custom_call.1} parent=1 // pred_fallthru
      _
    // Predicated region
    $region38: #{tpu_custom_call.1} parent=1 // pred_check
      _
    $region39: #{tpu_custom_call.1} parent=1 // pred_check_branch
      %796 = sbr.rel (0) target = $region41
    $region40: #{tpu_custom_call.1} parent=1 // pred_region
      %797 = dma.done [#allocation4], 512
    $region41: #{tpu_custom_call.1} parent=1 // pred_fallthru
      _
    %798 = vsyncpa [#allocation3], 1
    %799 = vsyncpa [#allocation6], 1
    %800 = vsyncpa [#allocation4], 1

</llo_original>
